<compile_context>
chip_gen: v7x
topology: tpu7x:2x2x1
jax: 0.10.0
libtpu: 0.0.40
codegen_flags: <defaults>
</compile_context>

<pallas_src>
import jax
import jax.numpy as jnp
from jax.experimental import pallas as pl
from jax.experimental.pallas import tpu as pltpu

_SLAB_WIDTH = 512                    # lane-dense last dim (multiple of 128)
_TARGET_TILE_BYTES = 2 * 1024 * 1024 # per input stream, per grid step


def _vmem_limit_bytes():
    """Generation-aware VMEM limit with headroom (v7x has only 64 MiB/TC)."""
    try:
        cap = int(pltpu.get_tpu_info().vmem_capacity_bytes)
    except Exception:
        cap = 64 * 1024 * 1024
    return max(32 * 1024 * 1024, min((cap * 3) // 4, 96 * 1024 * 1024))


def _bottleneck_kernel(mu_ref, log_var_ref, eps_ref, z_ref):
    """Elementwise z = mu + eps * exp(0.5 * log_var) on one VMEM tile."""
    mu = mu_ref[...].astype(jnp.float32)
    log_var = log_var_ref[...].astype(jnp.float32)
    eps = eps_ref[...].astype(jnp.float32)
    z = mu + eps * jnp.exp(0.5 * log_var)          # EUP exp + VPU fma
    z_ref[...] = z.astype(z_ref.dtype)


def _row_tile(total_rows, row_bytes):
    """Largest multiple-of-8 tile whose per-stream bytes ~ _TARGET_TILE_BYTES."""
    cap = max(8, ((_TARGET_TILE_BYTES // max(row_bytes, 1)) // 8) * 8)
    return total_rows if total_rows <= cap else cap


def _z_kernel_split(encoded, eps, z_dim):
    """z_dim % 128 == 0: let the BlockSpec DMA deliver mu / log_var halves."""
    B = encoded.shape[0]
    dtype = encoded.dtype
    itemsize = jnp.dtype(dtype).itemsize
    tb = _row_tile(B, z_dim * itemsize)
    grid = (pl.cdiv(B, tb),)

    return pl.pallas_call(
        _bottleneck_kernel,
        out_shape=jax.ShapeDtypeStruct((B, z_dim), dtype),
        grid=grid,
        in_specs=[
            pl.BlockSpec((tb, z_dim), lambda i: (i, 0)),  # mu half of encoded
            pl.BlockSpec((tb, z_dim), lambda i: (i, 1)),  # log_var half
            pl.BlockSpec((tb, z_dim), lambda i: (i, 0)),  # eps
        ],
        out_specs=pl.BlockSpec((tb, z_dim), lambda i: (i, 0)),
        compiler_params=pltpu.CompilerParams(
            dimension_semantics=("parallel",),
            vmem_limit_bytes=_vmem_limit_bytes(),
        ),
    )(encoded, encoded, eps)


def _z_kernel_lane_dense(mu, log_var, eps):
    """General case (small / unaligned z_dim): repack to lane-dense slabs."""
    B, z_dim = mu.shape
    dtype = mu.dtype
    n = B * z_dim
    w = _SLAB_WIDTH
    rows = pl.cdiv(n, w)
    pad = rows * w - n

    def to_slab(x):
        x = x.reshape(-1)
        if pad:
            x = jnp.pad(x, (0, pad))
        return x.reshape(rows, w)

    mu_s, lv_s, eps_s = to_slab(mu), to_slab(log_var), to_slab(eps)

    itemsize = jnp.dtype(dtype).itemsize
    tb = _row_tile(rows, w * itemsize)
    grid = (pl.cdiv(rows, tb),)

    z_s = pl.pallas_call(
        _bottleneck_kernel,
        out_shape=jax.ShapeDtypeStruct((rows, w), dtype),
        grid=grid,
        in_specs=[
            pl.BlockSpec((tb, w), lambda i: (i, 0)),
            pl.BlockSpec((tb, w), lambda i: (i, 0)),
            pl.BlockSpec((tb, w), lambda i: (i, 0)),
        ],
        out_specs=pl.BlockSpec((tb, w), lambda i: (i, 0)),
        compiler_params=pltpu.CompilerParams(
            dimension_semantics=("parallel",),
            vmem_limit_bytes=_vmem_limit_bytes(),
        ),
    )(mu_s, lv_s, eps_s)

    return z_s.reshape(-1)[:n].reshape(B, z_dim)


def beta_vae_bottleneck(encoded, eps, z_dim, *, min_kernel_elems=65536):
    """Forward of BetaVAEBottleneck.

    encoded: [B, 2*z_dim], eps: [B, z_dim] (the N(0,1) noise of re_parameterize).
    Returns (z, mu, log_var); mu / log_var are plain slices of `encoded`.
    """
    B, two_z = encoded.shape
    assert two_z == 2 * z_dim, "encoded feature dim must be 2*z_dim"
    assert eps.shape == (B, z_dim)
    eps = eps.astype(encoded.dtype)

    mu = encoded[:, :z_dim]
    log_var = encoded[:, z_dim:]

    # Tiny problems: fixed pallas_call + DMA setup cost dwarfs the work.
    if B * z_dim < min_kernel_elems:
        z = mu + eps * jnp.exp(0.5 * log_var)
        return z, mu, log_var

    if z_dim % 128 == 0:
        z = _z_kernel_split(encoded, eps, z_dim)
    else:
        z = _z_kernel_lane_dense(mu, log_var, eps)
    return z, mu, log_var


def beta_vae_bottleneck_ref(encoded, eps, z_dim):
    """Pure-JAX reference (mirrors the PyTorch forward)."""
    mu = encoded[:, :z_dim]
    log_var = encoded[:, z_dim:]
    std = jnp.exp(0.5 * log_var)
    z = mu + eps * std
    return z, mu, log_var


if __name__ == "__main__":
    key = jax.random.PRNGKey(0)

    def run_case(B, z_dim, min_kernel_elems, k):
        k_enc, k_eps = jax.random.split(k)
        encoded = jax.random.normal(k_enc, (B, 2 * z_dim), dtype=jnp.float32)
        eps = jax.random.normal(k_eps, (B, z_dim), dtype=jnp.float32)
        z, mu, log_var = beta_vae_bottleneck(
            encoded, eps, z_dim, min_kernel_elems=min_kernel_elems)
        jax.block_until_ready((z, mu, log_var))
        z_r, mu_r, lv_r = beta_vae_bottleneck_ref(encoded, eps, z_dim)
        assert jnp.allclose(z, z_r, atol=1e-5, rtol=1e-5)
        assert jnp.allclose(mu, mu_r)
        assert jnp.allclose(log_var, lv_r)

    keys = jax.random.split(key, 3)
    # 1) Module-default tiny shape (B=2, z_dim=10); force the Pallas path to
    #    exercise the lane-dense repack (default threshold would use the
    #    pure-jnp fallback here).
    run_case(2, 10, 0, keys[0])
    # 2) Lane-dense slab path at a modest memory-bound shape (z_dim not 128-aligned).
    run_case(4096, 32, 0, keys[1])
    # 3) DMA-side mu/log_var split path (z_dim % 128 == 0).
    run_case(512, 128, 0, keys[2])

    print("KERNEL_OK")
</pallas_src>

<mosaic_0001>
module attributes {stable_mosaic.version = 11 : i64} {
  func.func @_bottleneck_kernel(%arg0: i32, %arg1: memref<1x512xf32, #tpu.memory_space<vmem>>, %arg2: memref<1x512xf32, #tpu.memory_space<vmem>>, %arg3: memref<1x512xf32, #tpu.memory_space<vmem>>, %arg4: memref<1x512xf32, #tpu.memory_space<vmem>>) attributes {dimension_semantics = [#tpu.dimension_semantics<parallel>], iteration_bounds = array<i64: 1>, scalar_prefetch = 0 : i64, scratch_operands = 0 : i64, tpu.core_type = #tpu.core_type<tc>, window_params = [{transform_indices = @transform_0, window_bounds = array<i64: 1, 512>}, {transform_indices = @transform_1, window_bounds = array<i64: 1, 512>}, {transform_indices = @transform_2, window_bounds = array<i64: 1, 512>}, {transform_indices = @transform_3, window_bounds = array<i64: 1, 512>}]} {
    %c0 = arith.constant 0 : index
    %c0_0 = arith.constant 0 : index
    %0 = vector.load %arg1[%c0, %c0_0] : memref<1x512xf32, #tpu.memory_space<vmem>>, vector<1x512xf32>
    %c0_1 = arith.constant 0 : index
    %c0_2 = arith.constant 0 : index
    %1 = vector.load %arg2[%c0_1, %c0_2] : memref<1x512xf32, #tpu.memory_space<vmem>>, vector<1x512xf32>
    %c0_3 = arith.constant 0 : index
    %c0_4 = arith.constant 0 : index
    %2 = vector.load %arg3[%c0_3, %c0_4] : memref<1x512xf32, #tpu.memory_space<vmem>>, vector<1x512xf32>
    %cst = arith.constant 5.000000e-01 : f32
    %3 = vector.broadcast %cst : f32 to vector<1x512xf32>
    %4 = arith.mulf %3, %1 : vector<1x512xf32>
    %5 = math.exp %4 : vector<1x512xf32>
    %6 = arith.mulf %2, %5 : vector<1x512xf32>
    %7 = arith.addf %0, %6 : vector<1x512xf32>
    %c0_5 = arith.constant 0 : index
    %c0_6 = arith.constant 0 : index
    %8 = vector.load %arg4[%c0_5, %c0_6] : memref<1x512xf32, #tpu.memory_space<vmem>>, vector<1x512xf32>
    tpu.vector_store %arg4[%c0_5, %c0_6], %7 {strides = array<i32>} : memref<1x512xf32, #tpu.memory_space<vmem>>, vector<1x512xf32>,
    return
  }
  func.func @transform_0(%arg0: i32) -> (i32, i32) {
    %c0_i32 = arith.constant 0 : i32
    %c0_i32_0 = arith.constant 0 : i32
    return %arg0, %c0_i32 : i32, i32
  }
  func.func @transform_1(%arg0: i32) -> (i32, i32) {
    %c0_i32 = arith.constant 0 : i32
    %c0_i32_0 = arith.constant 0 : i32
    return %arg0, %c0_i32 : i32, i32
  }
  func.func @transform_2(%arg0: i32) -> (i32, i32) {
    %c0_i32 = arith.constant 0 : i32
    %c0_i32_0 = arith.constant 0 : i32
    return %arg0, %c0_i32 : i32, i32
  }
  func.func @transform_3(%arg0: i32) -> (i32, i32) {
    %c0_i32 = arith.constant 0 : i32
    %c0_i32_0 = arith.constant 0 : i32
    return %arg0, %c0_i32 : i32, i32
  }
}

</mosaic_0001>

<llo_original>
// kernel: tpu_custom_call.1
$region0: #{tpu_custom_call.1}
  #allocation0 [shape = 'u32[]', space=smem, size = 0x4, offset = 0x4, fixed_abs, tag = 'smem constant byte address 0x4 - core index']
  #allocation1 [shape = 'u32[144,128]{1,0:T(1,128)}', space=vmem, size = 0x12000, scoped, tag = 'internal scratch']
  %s0 = inlined_call_operand.hbm [shape: f32[1,512], index: 0, kind: input, shape index: {}]
  %s1 = inlined_call_operand.hbm [shape: f32[1,512], index: 1, kind: input, shape index: {}]
  %s2 = inlined_call_operand.vmem [shape: f32[1,512], index: 2, kind: input, shape index: {}]
  %s3 = inlined_call_operand.hbm [shape: f32[1,512], index: 3, kind: output, shape index: {}]
  %s4 = sld [smem:[#allocation0]]
  $region30: #{tpu_custom_call.1} parent=0
    _
  %s6 = ssub.s32 1, %s4
  %s7 = scalar_select 0, %s6, %s4
  $region1: #{tpu_custom_call.1} parent=0
    #allocation2 [shape = 'u8[2048]{0}', space=vmem, size = 0x800, scoped, tag = 'input window, operand 0, single buffered']
    #allocation3 [shape = 's32[1]{0}', space=sflag, size = 0x4, scoped, tag = 'scoped memory for tpu_custom_call.1']
    #allocation4 [shape = 's32[1]{0}', space=sflag, size = 0x4, scoped, tag = 'scoped memory for tpu_custom_call.1']
    #allocation5 [shape = 'u8[2048]{0}', space=vmem, size = 0x800, scoped, tag = 'input window, operand 1, single buffered']
    #allocation6 [shape = 's32[1]{0}', space=sflag, size = 0x4, scoped, tag = 'scoped memory for tpu_custom_call.1']
    #allocation7 [shape = 'u8[2048]{0}', space=vmem, size = 0x800, scoped, tag = 'output window, operand 0, single buffered']
    %8 = vsyncpa [#allocation3], 0
    %9 = vsyncpa [#allocation6], 0
    %10 = vsyncpa [#allocation4], 0
    // Predicated region
    $region2: #{tpu_custom_call.1} parent=1 // pred_check
      _
    $region3: #{tpu_custom_call.1} parent=1 // pred_check_branch
      %12 = sbr.rel (0) target = $region5
    $region4: #{tpu_custom_call.1} parent=1 // pred_region
      %s14 = ssub.s32 64, 64
      %15 = vsyncadd [#allocation3], %s14
      %s17 = sshll.u32 [#allocation2], 4
      %s18 = int_to_ptr.vmem [resolvable:$true] %s17
      %20 = dma.hbm_to_vmem [thread:$0]  %s0, 64, %s18, [#allocation3]
    $region5: #{tpu_custom_call.1} parent=1 // pred_fallthru
      _
    // Predicated region
    $region6: #{tpu_custom_call.1} parent=1 // pred_check
      _
    $region7: #{tpu_custom_call.1} parent=1 // pred_check_branch
      %22 = sbr.rel (0) target = $region9
    $region8: #{tpu_custom_call.1} parent=1 // pred_region
      %s24 = ssub.s32 64, 64
      %25 = vsyncadd [#allocation6], %s24
      %s27 = sshll.u32 [#allocation5], 4
      %s28 = int_to_ptr.vmem [resolvable:$true] %s27
      %30 = dma.hbm_to_vmem [thread:$0]  %s1, 64, %s28, [#allocation6]
    $region9: #{tpu_custom_call.1} parent=1 // pred_fallthru
      _
    // Predicated region
    $region10: #{tpu_custom_call.1} parent=1 // pred_check
      _
    $region11: #{tpu_custom_call.1} parent=1 // pred_check_branch
      %32 = sbr.rel (0) target = $region13
    $region12: #{tpu_custom_call.1} parent=1 // pred_region
      _
    $region13: #{tpu_custom_call.1} parent=1 // pred_fallthru
      _
    // Predicated region
    $region14: #{tpu_custom_call.1} parent=1 // pred_check
      _
    $region15: #{tpu_custom_call.1} parent=1 // pred_check_branch
      %34 = sbr.rel (0) target = $region17
    $region16: #{tpu_custom_call.1} parent=1 // pred_region
      %35 = dma.done [#allocation3], 64
    $region17: #{tpu_custom_call.1} parent=1 // pred_fallthru
      _
    // Predicated region
    $region18: #{tpu_custom_call.1} parent=1 // pred_check
      _
    $region19: #{tpu_custom_call.1} parent=1 // pred_check_branch
      %37 = sbr.rel (0) target = $region21
    $region20: #{tpu_custom_call.1} parent=1 // pred_region
      %38 = dma.done [#allocation6], 64
    $region21: #{tpu_custom_call.1} parent=1 // pred_fallthru
      _
    %v39 = vld [vmem:[#allocation2] sm:$0xf]
    %v40 = vld [vmem:[#allocation5] sm:$0xf]
    %v41 = vld [vmem:[%s2] sm:$0xf]
    %v42 = vmul.f32 %v40, 0.5
    %v43 = vmul.f32 %v42, 1.442695
    %v44 = vpow.pop %v43
    %v45 = vmul.f32 %v41, %v44
    %v46 = vadd.f32 %v39, %v45
    %v47 = vlaneseq
    %vm48 = vcmp.ge.s32.totalorder %v47, 0
    %vm49 = vcmp.lt.s32.totalorder %v47, 512
    %vm50 = vmand %vm48, %vm49
    %51 = vst.msk [vmem:[#allocation7] sm:$0xf] %vm50, %v46
    // Predicated region
    $region22: #{tpu_custom_call.1} parent=1 // pred_check
      _
    $region23: #{tpu_custom_call.1} parent=1 // pred_check_branch
      %53 = sbr.rel (0) target = $region25
    $region24: #{tpu_custom_call.1} parent=1 // pred_region
      %s55 = ssub.s32 64, 64
      %56 = vsyncadd [#allocation4], %s55
      %s58 = sshll.u32 [#allocation7], 4
      %s59 = int_to_ptr.vmem [resolvable:$true] %s58
      %61 = dma.vmem_to_hbm [thread:$0]  %s59, 64, %s3, [#allocation4]
    $region25: #{tpu_custom_call.1} parent=1 // pred_fallthru
      _
    // Predicated region
    $region26: #{tpu_custom_call.1} parent=1 // pred_check
      _
    $region27: #{tpu_custom_call.1} parent=1 // pred_check_branch
      %63 = sbr.rel (0) target = $region29
    $region28: #{tpu_custom_call.1} parent=1 // pred_region
      %64 = dma.done [#allocation4], 64
    $region29: #{tpu_custom_call.1} parent=1 // pred_fallthru
      _
    %65 = vsyncpa [#allocation3], 1
    %66 = vsyncpa [#allocation6], 1
    %67 = vsyncpa [#allocation4], 1

</llo_original>
